<compile_context>
chip_gen: v7x
topology: tpu7x:2x2x1
jax: 0.10.0
libtpu: 0.0.40
codegen_flags: <defaults>
</compile_context>

<pallas_src>
import functools

import jax
import jax.numpy as jnp
from jax.experimental import pallas as pl
from jax.experimental.pallas import tpu as pltpu

_LANE = 128
_SUBLANE = 8


def _round_up(v, m):
    return (v + m - 1) // m * m


# ----------------------------------------------------------------------------
# Fused FC-stack kernel: one M-tile of  relu(relu(x@W1+b1)@W2+b2)@W3+b3
# All-f32: MXU f32 matmuls are completely hidden under the HBM read of x.
# ----------------------------------------------------------------------------
def _fc2_fused_kernel(x_ref, w1_ref, b1_ref, w2_ref, b2_ref, w3_ref, b3_ref,
                      o_ref):
    h = jnp.dot(x_ref[...], w1_ref[...], preferred_element_type=jnp.float32)
    h = jnp.maximum(h + b1_ref[...], 0.0)
    h = jnp.dot(h, w2_ref[...], preferred_element_type=jnp.float32)
    h = jnp.maximum(h + b2_ref[...], 0.0)
    out = jnp.dot(h, w3_ref[...], preferred_element_type=jnp.float32)
    o_ref[...] = (out + b3_ref[...]).astype(o_ref.dtype)


# ----------------------------------------------------------------------------
# Wrapper: lane-dense weight padding, M-tiled grid (ragged last tile), slice.
# ----------------------------------------------------------------------------
def fc2layer_forward(x, params, *, input_size, output_size):
    # Matches PyTorch's x.view(-1, self.input_size).  No M padding, no cast:
    # the reshape is the only wrapper-side touch of x.
    x2 = x.reshape(-1, input_size).astype(jnp.float32)
    m = x2.shape[0]

    # Lane-dense padded widths for the tiny weight/bias operands so in-kernel
    # stores are full-width (avoid masked vst.msk on <128 lanes).
    k_pad = _round_up(input_size, _LANE)
    h1_pad = _round_up(32, _LANE)
    h2_pad = _round_up(16, _LANE)
    n_pad = _round_up(output_size, _LANE)

    # x only needs a K-pad when input_size isn't lane aligned (no-op here).
    if k_pad != input_size:
        x2 = jnp.pad(x2, ((0, 0), (0, k_pad - input_size)))

    # Row tile: up to 1024 rows, but split into >=2 tiles whenever M permits
    # so v7x can shard the "parallel" row axis across both TensorCores.
    # Double-buffered footprint at tile_m=1024 is ~10 MiB f32 — fits the
    # 32 MiB scoped-VMEM budget on every generation (v5e/v6e/v7x).
    if m >= _SUBLANE:
        tile_m = min(1024, _round_up(pl.cdiv(m, 2), _SUBLANE))
    else:
        tile_m = m  # block == full array dim for tiny batches
    grid_m = pl.cdiv(m, tile_m)

    def pad2(a, rows, cols):
        return jnp.pad(a, ((0, rows - a.shape[0]), (0, cols - a.shape[1])))

    w1 = pad2(params["w1"].astype(jnp.float32), k_pad, h1_pad)
    w2 = pad2(params["w2"].astype(jnp.float32), h1_pad, h2_pad)
    w3 = pad2(params["w3"].astype(jnp.float32), h2_pad, n_pad)
    b1 = pad2(params["b1"].reshape(1, -1).astype(jnp.float32), 1, h1_pad)
    b2 = pad2(params["b2"].reshape(1, -1).astype(jnp.float32), 1, h2_pad)
    b3 = pad2(params["b3"].reshape(1, -1).astype(jnp.float32), 1, n_pad)

    full = lambda i: (0, 0)  # weights/biases resident across all row tiles

    out = pl.pallas_call(
        _fc2_fused_kernel,
        out_shape=jax.ShapeDtypeStruct((m, n_pad), jnp.float32),
        grid_spec=pltpu.PrefetchScalarGridSpec(
            num_scalar_prefetch=0,
            grid=(grid_m,),
            in_specs=[
                pl.BlockSpec((tile_m, k_pad), lambda i: (i, 0)),
                pl.BlockSpec((k_pad, h1_pad), full),
                pl.BlockSpec((1, h1_pad), full),
                pl.BlockSpec((h1_pad, h2_pad), full),
                pl.BlockSpec((1, h2_pad), full),
                pl.BlockSpec((h2_pad, n_pad), full),
                pl.BlockSpec((1, n_pad), full),
            ],
            out_specs=pl.BlockSpec((tile_m, n_pad), lambda i: (i, 0)),
        ),
        compiler_params=pltpu.CompilerParams(
            dimension_semantics=("parallel",),   # shard row tiles on v7x 2-TC
            vmem_limit_bytes=32 * 1024 * 1024,   # real footprint ~10 MiB
        ),
    )(x2, w1, b1, w2, b2, w3, b3)

    # Only the zero-padded output columns need slicing off; no M padding was
    # introduced, so rows are already exact.
    return out[:, :output_size]


# ----------------------------------------------------------------------------
# Parameter init (PyTorch nn.Linear default: U(-1/sqrt(fan_in), 1/sqrt(fan_in)))
# ----------------------------------------------------------------------------
def init_params(key, input_size, output_size):
    ks = jax.random.split(key, 6)

    def lin(kw, kb, fin, fout):
        bound = 1.0 / jnp.sqrt(fin)
        w = jax.random.uniform(kw, (fin, fout), jnp.float32, -bound, bound)
        b = jax.random.uniform(kb, (fout,), jnp.float32, -bound, bound)
        return w, b

    w1, b1 = lin(ks[0], ks[1], input_size, 32)
    w2, b2 = lin(ks[2], ks[3], 32, 16)
    w3, b3 = lin(ks[4], ks[5], 16, output_size)
    return {"w1": w1, "b1": b1, "w2": w2, "b2": b2, "w3": w3, "b3": b3}


if __name__ == "__main__":
    INPUT_SIZE = 4 * 16 * 16   # x.view(-1, input_size) on a (2, 4, 16, 16) input
    OUTPUT_SIZE = 10

    key = jax.random.PRNGKey(0)
    k_params, k_x = jax.random.split(key)
    params = init_params(k_params, INPUT_SIZE, OUTPUT_SIZE)
    x = jax.random.normal(k_x, (2, 4, 16, 16), jnp.float32)

    fwd = jax.jit(functools.partial(
        fc2layer_forward, input_size=INPUT_SIZE, output_size=OUTPUT_SIZE))
    out = jax.block_until_ready(fwd(x, params))
    assert out.shape == (2, OUTPUT_SIZE), out.shape
    assert jnp.all(jnp.isfinite(out))

    # Pure-JAX f32 reference (XLA matmuls use default TPU precision).
    ref = x.reshape(-1, INPUT_SIZE)
    ref = jnp.maximum(ref @ params["w1"] + params["b1"], 0.0)
    ref = jnp.maximum(ref @ params["w2"] + params["b2"], 0.0)
    ref = ref @ params["w3"] + params["b3"]
    assert jnp.allclose(out, ref, atol=2e-2, rtol=2e-2), float(
        jnp.max(jnp.abs(out - ref)))

    print("KERNEL_OK")
</pallas_src>

<mosaic_0001>
module attributes {stable_mosaic.version = 11 : i64} {
  func.func @_fc2_fused_kernel(%arg0: i32, %arg1: memref<2x1024xf32, #tpu.memory_space<vmem>>, %arg2: memref<1024x128xf32, #tpu.memory_space<vmem>>, %arg3: memref<1x128xf32, #tpu.memory_space<vmem>>, %arg4: memref<128x128xf32, #tpu.memory_space<vmem>>, %arg5: memref<1x128xf32, #tpu.memory_space<vmem>>, %arg6: memref<128x128xf32, #tpu.memory_space<vmem>>, %arg7: memref<1x128xf32, #tpu.memory_space<vmem>>, %arg8: memref<2x128xf32, #tpu.memory_space<vmem>>) attributes {dimension_semantics = [#tpu.dimension_semantics<parallel>], iteration_bounds = array<i64: 1>, scalar_prefetch = 0 : i64, scratch_operands = 0 : i64, tpu.core_type = #tpu.core_type<tc>, window_params = [{transform_indices = @transform_0, window_bounds = array<i64: 2, 1024>}, {pipeline_mode = #tpu.pipeline_mode<synchronous>, transform_indices = @transform_1, window_bounds = array<i64: 1024, 128>}, {pipeline_mode = #tpu.pipeline_mode<synchronous>, transform_indices = @transform_2, window_bounds = array<i64: 1, 128>}, {pipeline_mode = #tpu.pipeline_mode<synchronous>, transform_indices = @transform_3, window_bounds = array<i64: 128, 128>}, {pipeline_mode = #tpu.pipeline_mode<synchronous>, transform_indices = @transform_4, window_bounds = array<i64: 1, 128>}, {pipeline_mode = #tpu.pipeline_mode<synchronous>, transform_indices = @transform_5, window_bounds = array<i64: 128, 128>}, {pipeline_mode = #tpu.pipeline_mode<synchronous>, transform_indices = @transform_6, window_bounds = array<i64: 1, 128>}, {transform_indices = @transform_7, window_bounds = array<i64: 2, 128>}]} {
    %c0 = arith.constant 0 : index
    %c0_0 = arith.constant 0 : index
    %0 = vector.load %arg1[%c0, %c0_0] : memref<2x1024xf32, #tpu.memory_space<vmem>>, vector<2x1024xf32>
    %c0_1 = arith.constant 0 : index
    %c0_2 = arith.constant 0 : index
    %1 = vector.load %arg2[%c0_1, %c0_2] : memref<1024x128xf32, #tpu.memory_space<vmem>>, vector<1024x128xf32>
    %cst = arith.constant dense<0.000000e+00> : vector<2x128xf32>
    %2 = tpu.matmul %0, %1, %cst {dimension_numbers = #tpu.dot_dimension_numbers<[1], [0], [0], [1], [0, 0, 1, 1], [], []>} : vector<2x1024xf32>, vector<1024x128xf32>, vector<2x128xf32> -> vector<2x128xf32>
    %c0_3 = arith.constant 0 : index
    %c0_4 = arith.constant 0 : index
    %3 = vector.load %arg3[%c0_3, %c0_4] : memref<1x128xf32, #tpu.memory_space<vmem>>, vector<1x128xf32>
    %4 = vector.broadcast %3 : vector<1x128xf32> to vector<2x128xf32>
    %5 = arith.addf %2, %4 : vector<2x128xf32>
    %cst_5 = arith.constant 0.000000e+00 : f32
    %6 = vector.broadcast %cst_5 : f32 to vector<2x128xf32>
    %7 = arith.maximumf %5, %6 : vector<2x128xf32>
    %c0_6 = arith.constant 0 : index
    %c0_7 = arith.constant 0 : index
    %8 = vector.load %arg4[%c0_6, %c0_7] : memref<128x128xf32, #tpu.memory_space<vmem>>, vector<128x128xf32>
    %cst_8 = arith.constant dense<0.000000e+00> : vector<2x128xf32>
    %9 = tpu.matmul %7, %8, %cst_8 {dimension_numbers = #tpu.dot_dimension_numbers<[1], [0], [0], [1], [0, 0, 1, 1], [], []>} : vector<2x128xf32>, vector<128x128xf32>, vector<2x128xf32> -> vector<2x128xf32>
    %c0_9 = arith.constant 0 : index
    %c0_10 = arith.constant 0 : index
    %10 = vector.load %arg5[%c0_9, %c0_10] : memref<1x128xf32, #tpu.memory_space<vmem>>, vector<1x128xf32>
    %11 = vector.broadcast %10 : vector<1x128xf32> to vector<2x128xf32>
    %12 = arith.addf %9, %11 : vector<2x128xf32>
    %cst_11 = arith.constant 0.000000e+00 : f32
    %13 = vector.broadcast %cst_11 : f32 to vector<2x128xf32>
    %14 = arith.maximumf %12, %13 : vector<2x128xf32>
    %c0_12 = arith.constant 0 : index
    %c0_13 = arith.constant 0 : index
    %15 = vector.load %arg6[%c0_12, %c0_13] : memref<128x128xf32, #tpu.memory_space<vmem>>, vector<128x128xf32>
    %cst_14 = arith.constant dense<0.000000e+00> : vector<2x128xf32>
    %16 = tpu.matmul %14, %15, %cst_14 {dimension_numbers = #tpu.dot_dimension_numbers<[1], [0], [0], [1], [0, 0, 1, 1], [], []>} : vector<2x128xf32>, vector<128x128xf32>, vector<2x128xf32> -> vector<2x128xf32>
    %c0_15 = arith.constant 0 : index
    %c0_16 = arith.constant 0 : index
    %17 = vector.load %arg7[%c0_15, %c0_16] : memref<1x128xf32, #tpu.memory_space<vmem>>, vector<1x128xf32>
    %18 = vector.broadcast %17 : vector<1x128xf32> to vector<2x128xf32>
    %19 = arith.addf %16, %18 : vector<2x128xf32>
    %c0_17 = arith.constant 0 : index
    %c0_18 = arith.constant 0 : index
    %20 = vector.load %arg8[%c0_17, %c0_18] : memref<2x128xf32, #tpu.memory_space<vmem>>, vector<2x128xf32>
    tpu.vector_store %arg8[%c0_17, %c0_18], %19 {strides = array<i32>} : memref<2x128xf32, #tpu.memory_space<vmem>>, vector<2x128xf32>,
    return
  }
  func.func @transform_0(%arg0: i32) -> (i32, i32) {
    %c0_i32 = arith.constant 0 : i32
    %c0_i32_0 = arith.constant 0 : i32
    return %arg0, %c0_i32 : i32, i32
  }
  func.func @transform_1(%arg0: i32) -> (i32, i32) {
    %c0_i32 = arith.constant 0 : i32
    %c0_i32_0 = arith.constant 0 : i32
    %c0_i32_1 = arith.constant 0 : i32
    return %c0_i32, %c0_i32_0 : i32, i32
  }
  func.func @transform_2(%arg0: i32) -> (i32, i32) {
    %c0_i32 = arith.constant 0 : i32
    %c0_i32_0 = arith.constant 0 : i32
    %c0_i32_1 = arith.constant 0 : i32
    return %c0_i32, %c0_i32_0 : i32, i32
  }
  func.func @transform_3(%arg0: i32) -> (i32, i32) {
    %c0_i32 = arith.constant 0 : i32
    %c0_i32_0 = arith.constant 0 : i32
    %c0_i32_1 = arith.constant 0 : i32
    return %c0_i32, %c0_i32_0 : i32, i32
  }
  func.func @transform_4(%arg0: i32) -> (i32, i32) {
    %c0_i32 = arith.constant 0 : i32
    %c0_i32_0 = arith.constant 0 : i32
    %c0_i32_1 = arith.constant 0 : i32
    return %c0_i32, %c0_i32_0 : i32, i32
  }
  func.func @transform_5(%arg0: i32) -> (i32, i32) {
    %c0_i32 = arith.constant 0 : i32
    %c0_i32_0 = arith.constant 0 : i32
    %c0_i32_1 = arith.constant 0 : i32
    return %c0_i32, %c0_i32_0 : i32, i32
  }
  func.func @transform_6(%arg0: i32) -> (i32, i32) {
    %c0_i32 = arith.constant 0 : i32
    %c0_i32_0 = arith.constant 0 : i32
    %c0_i32_1 = arith.constant 0 : i32
    return %c0_i32, %c0_i32_0 : i32, i32
  }
  func.func @transform_7(%arg0: i32) -> (i32, i32) {
    %c0_i32 = arith.constant 0 : i32
    %c0_i32_0 = arith.constant 0 : i32
    return %arg0, %c0_i32 : i32, i32
  }
}

</mosaic_0001>

<llo_original>
// kernel: fc2layer_forward.1
$region0: #{fc2layer_forward.1}
  #allocation0 [shape = 'u32[]', space=smem, size = 0x4, offset = 0x4, fixed_abs, tag = 'smem constant byte address 0x4 - core index']
  #allocation1 [shape = 'u32[144,128]{1,0:T(1,128)}', space=vmem, size = 0x12000, scoped, tag = 'internal scratch']
  %s0 = inlined_call_operand.vmem [shape: f32[2,1024], index: 0, kind: input, shape index: {}]
  %s1 = inlined_call_operand.vmem [shape: f32[1024,128], index: 1, kind: input, shape index: {}]
  %s2 = inlined_call_operand.vmem [shape: f32[1,128], index: 2, kind: input, shape index: {}]
  %s3 = inlined_call_operand.vmem [shape: f32[128,128], index: 3, kind: input, shape index: {}]
  %s4 = inlined_call_operand.vmem [shape: f32[1,128], index: 4, kind: input, shape index: {}]
  %s5 = inlined_call_operand.vmem [shape: f32[128,128], index: 5, kind: input, shape index: {}]
  %s6 = inlined_call_operand.vmem [shape: f32[1,128], index: 6, kind: input, shape index: {}]
  %s7 = inlined_call_operand.hbm [shape: f32[2,128], index: 7, kind: output, shape index: {}]
  %s8 = sld [smem:[#allocation0]]
  $region38: #{fc2layer_forward.1} parent=0
    _
  %s10 = ssub.s32 1, %s8
  %s11 = scalar_select 0, %s10, %s8
  $region1: #{fc2layer_forward.1} parent=0
    #allocation2 [shape = 'u8[1024]{0}', space=vmem, size = 0x400, scoped, tag = 'output window, operand 0, single buffered']
    #allocation3 [shape = 's32[1]{0}', space=sflag, size = 0x4, scoped, tag = 'scoped memory for fc2layer_forward.1']
    %12 = vsyncpa [#allocation3], 0
    // Predicated region
    $region2: #{fc2layer_forward.1} parent=1 // pred_check
      _
    $region3: #{fc2layer_forward.1} parent=1 // pred_check_branch
      %14 = sbr.rel (0) target = $region5
    $region4: #{fc2layer_forward.1} parent=1 // pred_region
      _
    $region5: #{fc2layer_forward.1} parent=1 // pred_fallthru
      _
    // Predicated region
    $region6: #{fc2layer_forward.1} parent=1 // pred_check
      _
    $region7: #{fc2layer_forward.1} parent=1 // pred_check_branch
      %16 = sbr.rel (0) target = $region9
    $region8: #{fc2layer_forward.1} parent=1 // pred_region
      _
    $region9: #{fc2layer_forward.1} parent=1 // pred_fallthru
      _
    // Predicated region
    $region10: #{fc2layer_forward.1} parent=1 // pred_check
      _
    $region11: #{fc2layer_forward.1} parent=1 // pred_check_branch
      %18 = sbr.rel (0) target = $region13
    $region12: #{fc2layer_forward.1} parent=1 // pred_region
      _
    $region13: #{fc2layer_forward.1} parent=1 // pred_fallthru
      _
    // Predicated region
    $region14: #{fc2layer_forward.1} parent=1 // pred_check
      _
    $region15: #{fc2layer_forward.1} parent=1 // pred_check_branch
      %20 = sbr.rel (0) target = $region17
    $region16: #{fc2layer_forward.1} parent=1 // pred_region
      _
    $region17: #{fc2layer_forward.1} parent=1 // pred_fallthru
      _
    // Predicated region
    $region18: #{fc2layer_forward.1} parent=1 // pred_check
      _
    $region19: #{fc2layer_forward.1} parent=1 // pred_check_branch
      %22 = sbr.rel (0) target = $region21
    $region20: #{fc2layer_forward.1} parent=1 // pred_region
      _
    $region21: #{fc2layer_forward.1} parent=1 // pred_fallthru
      _
    // Predicated region
    $region22: #{fc2layer_forward.1} parent=1 // pred_check
      _
    $region23: #{fc2layer_forward.1} parent=1 // pred_check_branch
      %24 = sbr.rel (0) target = $region25
    $region24: #{fc2layer_forward.1} parent=1 // pred_region
      _
    $region25: #{fc2layer_forward.1} parent=1 // pred_fallthru
      _
    // Predicated region
    $region26: #{fc2layer_forward.1} parent=1 // pred_check
      _
    $region27: #{fc2layer_forward.1} parent=1 // pred_check_branch
      %26 = sbr.rel (0) target = $region29
    $region28: #{fc2layer_forward.1} parent=1 // pred_region
      _
    $region29: #{fc2layer_forward.1} parent=1 // pred_fallthru
      _
    %v27 = vld [vmem:[%s0] sm:$0xff]
    %v28 = vld [vmem:[%s0 + $0x8] sm:$0xff]
    %v29 = vld [vmem:[%s1] sm:$0xff]
    %v30 = vld [vmem:[%s1 + $0x8] sm:$0xff]
    %v31 = vld [vmem:[%s1 + $0x10] sm:$0xff]
    %v32 = vld [vmem:[%s1 + $0x18] sm:$0xff]
    %v33 = vld [vmem:[%s1 + $0x20] sm:$0xff]
    %v34 = vld [vmem:[%s1 + $0x28] sm:$0xff]
    %v35 = vld [vmem:[%s1 + $0x30] sm:$0xff]
    %v36 = vld [vmem:[%s1 + $0x38] sm:$0xff]
    %v37 = vld [vmem:[%s1 + $0x40] sm:$0xff]
    %v38 = vld [vmem:[%s1 + $0x48] sm:$0xff]
    %v39 = vld [vmem:[%s1 + $0x50] sm:$0xff]
    %v40 = vld [vmem:[%s1 + $0x58] sm:$0xff]
    %v41 = vld [vmem:[%s1 + $0x60] sm:$0xff]
    %v42 = vld [vmem:[%s1 + $0x68] sm:$0xff]
    %v43 = vld [vmem:[%s1 + $0x70] sm:$0xff]
    %v44 = vld [vmem:[%s1 + $0x78] sm:$0xff]
    %v45 = vld [vmem:[%s1 + $0x80] sm:$0xff]
    %v46 = vld [vmem:[%s1 + $0x88] sm:$0xff]
    %v47 = vld [vmem:[%s1 + $0x90] sm:$0xff]
    %v48 = vld [vmem:[%s1 + $0x98] sm:$0xff]
    %v49 = vld [vmem:[%s1 + $0xa0] sm:$0xff]
    %v50 = vld [vmem:[%s1 + $0xa8] sm:$0xff]
    %v51 = vld [vmem:[%s1 + $0xb0] sm:$0xff]
    %v52 = vld [vmem:[%s1 + $0xb8] sm:$0xff]
    %v53 = vld [vmem:[%s1 + $0xc0] sm:$0xff]
    %v54 = vld [vmem:[%s1 + $0xc8] sm:$0xff]
    %v55 = vld [vmem:[%s1 + $0xd0] sm:$0xff]
    %v56 = vld [vmem:[%s1 + $0xd8] sm:$0xff]
    %v57 = vld [vmem:[%s1 + $0xe0] sm:$0xff]
    %v58 = vld [vmem:[%s1 + $0xe8] sm:$0xff]
    %v59 = vld [vmem:[%s1 + $0xf0] sm:$0xff]
    %v60 = vld [vmem:[%s1 + $0xf8] sm:$0xff]
    %v61 = vld [vmem:[%s1 + $0x100] sm:$0xff]
    %v62 = vld [vmem:[%s1 + $0x108] sm:$0xff]
    %v63 = vld [vmem:[%s1 + $0x110] sm:$0xff]
    %v64 = vld [vmem:[%s1 + $0x118] sm:$0xff]
    %v65 = vld [vmem:[%s1 + $0x120] sm:$0xff]
    %v66 = vld [vmem:[%s1 + $0x128] sm:$0xff]
    %v67 = vld [vmem:[%s1 + $0x130] sm:$0xff]
    %v68 = vld [vmem:[%s1 + $0x138] sm:$0xff]
    %v69 = vld [vmem:[%s1 + $0x140] sm:$0xff]
    %v70 = vld [vmem:[%s1 + $0x148] sm:$0xff]
    %v71 = vld [vmem:[%s1 + $0x150] sm:$0xff]
    %v72 = vld [vmem:[%s1 + $0x158] sm:$0xff]
    %v73 = vld [vmem:[%s1 + $0x160] sm:$0xff]
    %v74 = vld [vmem:[%s1 + $0x168] sm:$0xff]
    %v75 = vld [vmem:[%s1 + $0x170] sm:$0xff]
    %v76 = vld [vmem:[%s1 + $0x178] sm:$0xff]
    %v77 = vld [vmem:[%s1 + $0x180] sm:$0xff]
    %v78 = vld [vmem:[%s1 + $0x188] sm:$0xff]
    %v79 = vld [vmem:[%s1 + $0x190] sm:$0xff]
    %v80 = vld [vmem:[%s1 + $0x198] sm:$0xff]
    %v81 = vld [vmem:[%s1 + $0x1a0] sm:$0xff]
    %v82 = vld [vmem:[%s1 + $0x1a8] sm:$0xff]
    %v83 = vld [vmem:[%s1 + $0x1b0] sm:$0xff]
    %v84 = vld [vmem:[%s1 + $0x1b8] sm:$0xff]
    %v85 = vld [vmem:[%s1 + $0x1c0] sm:$0xff]
    %v86 = vld [vmem:[%s1 + $0x1c8] sm:$0xff]
    %v87 = vld [vmem:[%s1 + $0x1d0] sm:$0xff]
    %v88 = vld [vmem:[%s1 + $0x1d8] sm:$0xff]
    %v89 = vld [vmem:[%s1 + $0x1e0] sm:$0xff]
    %v90 = vld [vmem:[%s1 + $0x1e8] sm:$0xff]
    %v91 = vld [vmem:[%s1 + $0x1f0] sm:$0xff]
    %v92 = vld [vmem:[%s1 + $0x1f8] sm:$0xff]
    %v93 = vld [vmem:[%s1 + $0x200] sm:$0xff]
    %v94 = vld [vmem:[%s1 + $0x208] sm:$0xff]
    %v95 = vld [vmem:[%s1 + $0x210] sm:$0xff]
    %v96 = vld [vmem:[%s1 + $0x218] sm:$0xff]
    %v97 = vld [vmem:[%s1 + $0x220] sm:$0xff]
    %v98 = vld [vmem:[%s1 + $0x228] sm:$0xff]
    %v99 = vld [vmem:[%s1 + $0x230] sm:$0xff]
    %v100 = vld [vmem:[%s1 + $0x238] sm:$0xff]
    %v101 = vld [vmem:[%s1 + $0x240] sm:$0xff]
    %v102 = vld [vmem:[%s1 + $0x248] sm:$0xff]
    %v103 = vld [vmem:[%s1 + $0x250] sm:$0xff]
    %v104 = vld [vmem:[%s1 + $0x258] sm:$0xff]
    %v105 = vld [vmem:[%s1 + $0x260] sm:$0xff]
    %v106 = vld [vmem:[%s1 + $0x268] sm:$0xff]
    %v107 = vld [vmem:[%s1 + $0x270] sm:$0xff]
    %v108 = vld [vmem:[%s1 + $0x278] sm:$0xff]
    %v109 = vld [vmem:[%s1 + $0x280] sm:$0xff]
    %v110 = vld [vmem:[%s1 + $0x288] sm:$0xff]
    %v111 = vld [vmem:[%s1 + $0x290] sm:$0xff]
    %v112 = vld [vmem:[%s1 + $0x298] sm:$0xff]
    %v113 = vld [vmem:[%s1 + $0x2a0] sm:$0xff]
    %v114 = vld [vmem:[%s1 + $0x2a8] sm:$0xff]
    %v115 = vld [vmem:[%s1 + $0x2b0] sm:$0xff]
    %v116 = vld [vmem:[%s1 + $0x2b8] sm:$0xff]
    %v117 = vld [vmem:[%s1 + $0x2c0] sm:$0xff]
    %v118 = vld [vmem:[%s1 + $0x2c8] sm:$0xff]
    %v119 = vld [vmem:[%s1 + $0x2d0] sm:$0xff]
    %v120 = vld [vmem:[%s1 + $0x2d8] sm:$0xff]
    %v121 = vld [vmem:[%s1 + $0x2e0] sm:$0xff]
    %v122 = vld [vmem:[%s1 + $0x2e8] sm:$0xff]
    %v123 = vld [vmem:[%s1 + $0x2f0] sm:$0xff]
    %v124 = vld [vmem:[%s1 + $0x2f8] sm:$0xff]
    %v125 = vld [vmem:[%s1 + $0x300] sm:$0xff]
    %v126 = vld [vmem:[%s1 + $0x308] sm:$0xff]
    %v127 = vld [vmem:[%s1 + $0x310] sm:$0xff]
    %v128 = vld [vmem:[%s1 + $0x318] sm:$0xff]
    %v129 = vld [vmem:[%s1 + $0x320] sm:$0xff]
    %v130 = vld [vmem:[%s1 + $0x328] sm:$0xff]
    %v131 = vld [vmem:[%s1 + $0x330] sm:$0xff]
    %v132 = vld [vmem:[%s1 + $0x338] sm:$0xff]
    %v133 = vld [vmem:[%s1 + $0x340] sm:$0xff]
    %v134 = vld [vmem:[%s1 + $0x348] sm:$0xff]
    %v135 = vld [vmem:[%s1 + $0x350] sm:$0xff]
    %v136 = vld [vmem:[%s1 + $0x358] sm:$0xff]
    %v137 = vld [vmem:[%s1 + $0x360] sm:$0xff]
    %v138 = vld [vmem:[%s1 + $0x368] sm:$0xff]
    %v139 = vld [vmem:[%s1 + $0x370] sm:$0xff]
    %v140 = vld [vmem:[%s1 + $0x378] sm:$0xff]
    %v141 = vld [vmem:[%s1 + $0x380] sm:$0xff]
    %v142 = vld [vmem:[%s1 + $0x388] sm:$0xff]
    %v143 = vld [vmem:[%s1 + $0x390] sm:$0xff]
    %v144 = vld [vmem:[%s1 + $0x398] sm:$0xff]
    %v145 = vld [vmem:[%s1 + $0x3a0] sm:$0xff]
    %v146 = vld [vmem:[%s1 + $0x3a8] sm:$0xff]
    %v147 = vld [vmem:[%s1 + $0x3b0] sm:$0xff]
    %v148 = vld [vmem:[%s1 + $0x3b8] sm:$0xff]
    %v149 = vld [vmem:[%s1 + $0x3c0] sm:$0xff]
    %v150 = vld [vmem:[%s1 + $0x3c8] sm:$0xff]
    %v151 = vld [vmem:[%s1 + $0x3d0] sm:$0xff]
    %v152 = vld [vmem:[%s1 + $0x3d8] sm:$0xff]
    %v153 = vld [vmem:[%s1 + $0x3e0] sm:$0xff]
    %v154 = vld [vmem:[%s1 + $0x3e8] sm:$0xff]
    %v155 = vld [vmem:[%s1 + $0x3f0] sm:$0xff]
    %v156 = vld [vmem:[%s1 + $0x3f8] sm:$0xff]
    %v157 = vld [vmem:[%s2] sm:$0x1]
    %v159 = vlaneseq
    %v160 = vshrl.u32 %v159, 7
    %v161 = vsub.s32 0, %v160
    %v162 = vrot.slane %v157, %v161
    %v166 = vcombine.high %v27, %v27
    %v168 = vunpack.c.l.s4 1983009808
    %v169 = vunpack.c.0.s8 %v168
    %v170 = vlaneseq
    %v171 = vshrl.u32 %v170, 7
    %v172 = vsub.s32 %v169, %v171
    %v173 = vrot.slane %v27, %v172
    %v175 = vunpack.c.l.s4 1983009808
    %v176 = vunpack.c.0.s8 %v175
    %v177 = vlaneseq
    %v178 = vshrl.u32 %v177, 7
    %v179 = vsub.s32 %v176, %v178
    %v180 = vrot.slane %v166, %v179
    %v181 = vcombine.high %v173, %v173
    %v182 = vcombine.high %v180, %v180
    %v183 = vcombine.high %v28, %v28
    %v185 = vunpack.c.l.s4 1983009808
    %v186 = vunpack.c.0.s8 %v185
    %v187 = vlaneseq
    %v188 = vshrl.u32 %v187, 7
    %v189 = vsub.s32 %v186, %v188
    %v190 = vrot.slane %v28, %v189
    %v192 = vunpack.c.l.s4 1983009808
    %v193 = vunpack.c.0.s8 %v192
    %v194 = vlaneseq
    %v195 = vshrl.u32 %v194, 7
    %v196 = vsub.s32 %v193, %v195
    %v197 = vrot.slane %v183, %v196
    %v198 = vcombine.high %v190, %v190
    %v199 = vcombine.high %v197, %v197
    %208 = vmatprep.subr.mxu0 0.0
    %209 = vmatpush1.msra.mxu0 %v29
    %210 = vmatprep.subr.mxu0 0.0
    %211 = vmatpush1.msra.mxu0 %v30
    %212 = vmatprep.subr.mxu0 0.0
    %213 = vmatpush1.msra.mxu0 %v31
    %214 = vmatprep.subr.mxu0 0.0
    %215 = vmatpush1.msra.mxu0 %v32
    %216 = vmatprep.subr.mxu0 0.0
    %217 = vmatpush1.msra.mxu0 %v33
    %218 = vmatprep.subr.mxu0 0.0
    %219 = vmatpush1.msra.mxu0 %v34
    %220 = vmatprep.subr.mxu0 0.0
    %221 = vmatpush1.msra.mxu0 %v35
    %222 = vmatprep.subr.mxu0 0.0
    %223 = vmatpush1.msra.mxu0 %v36
    %224 = vmatprep.subr.mxu0 0.0
    %225 = vmatpush1.msra.mxu0 %v37
    %226 = vmatprep.subr.mxu0 0.0
    %227 = vmatpush1.msra.mxu0 %v38
    %228 = vmatprep.subr.mxu0 0.0
    %229 = vmatpush1.msra.mxu0 %v39
    %230 = vmatprep.subr.mxu0 0.0
    %231 = vmatpush1.msra.mxu0 %v40
    %232 = vmatprep.subr.mxu0 0.0
    %233 = vmatpush1.msra.mxu0 %v41
    %234 = vmatprep.subr.mxu0 0.0
    %235 = vmatpush1.msra.mxu0 %v42
    %236 = vmatprep.subr.mxu0 0.0
    %237 = vmatpush1.msra.mxu0 %v43
    %238 = vmatprep.subr.mxu0 0.0
    %239 = vmatpush1.msra.mxu0 %v44
    %240 = vmatprep.subr.mxu0 0.0
    %241 = vmatpush1.msra.mxu0 %v45
    %242 = vmatprep.subr.mxu0 0.0
    %243 = vmatpush1.msra.mxu0 %v46
    %244 = vmatprep.subr.mxu0 0.0
    %245 = vmatpush1.msra.mxu0 %v47
    %246 = vmatprep.subr.mxu0 0.0
    %247 = vmatpush1.msra.mxu0 %v48
    %248 = vmatprep.subr.mxu0 0.0
    %249 = vmatpush1.msra.mxu0 %v49
    %250 = vmatprep.subr.mxu0 0.0
    %251 = vmatpush1.msra.mxu0 %v50
    %252 = vmatprep.subr.mxu0 0.0
    %253 = vmatpush1.msra.mxu0 %v51
    %254 = vmatprep.subr.mxu0 0.0
    %255 = vmatpush1.msra.mxu0 %v52
    %256 = vmatprep.subr.mxu0 0.0
    %257 = vmatpush1.msra.mxu0 %v53
    %258 = vmatprep.subr.mxu0 0.0
    %259 = vmatpush1.msra.mxu0 %v54
    %260 = vmatprep.subr.mxu0 0.0
    %261 = vmatpush1.msra.mxu0 %v55
    %262 = vmatprep.subr.mxu0 0.0
    %263 = vmatpush1.msra.mxu0 %v56
    %264 = vmatprep.subr.mxu0 0.0
    %265 = vmatpush1.msra.mxu0 %v57
    %266 = vmatprep.subr.mxu0 0.0
    %267 = vmatpush1.msra.mxu0 %v58
    %268 = vmatprep.subr.mxu0 0.0
    %269 = vmatpush1.msra.mxu0 %v59
    %270 = vmatprep.subr.mxu0 0.0
    %271 = vmatpush1.msra.mxu0 %v60
    %272 = vmatprep.mubr.f32.mxu0 %v181
    %273 = vmatmul.mubr.f32.gmra.mrb[0].mxu0 %v173
    %v274 = vpop.f32.mrb[0].mxu0
    %v275 = vadd.f32 %v162, %v274
    %v276 = vpop.f32.mrb[0].mxu0
    %277 = vdwg.mxu0
    %278 = vmatprep.subr.mxu0 0.0
    %279 = vmatpush1.msra.mxu0 %v61
    %280 = vmatprep.subr.mxu0 0.0
    %281 = vmatpush1.msra.mxu0 %v62
    %282 = vmatprep.subr.mxu0 0.0
    %283 = vmatpush1.msra.mxu0 %v63
    %284 = vmatprep.subr.mxu0 0.0
    %285 = vmatpush1.msra.mxu0 %v64
    %286 = vmatprep.subr.mxu0 0.0
    %287 = vmatpush1.msra.mxu0 %v65
    %288 = vmatprep.subr.mxu0 0.0
    %289 = vmatpush1.msra.mxu0 %v66
    %290 = vmatprep.subr.mxu0 0.0
    %291 = vmatpush1.msra.mxu0 %v67
    %292 = vmatprep.subr.mxu0 0.0
    %293 = vmatpush1.msra.mxu0 %v68
    %294 = vmatprep.subr.mxu0 0.0
    %295 = vmatpush1.msra.mxu0 %v69
    %296 = vmatprep.subr.mxu0 0.0
    %297 = vmatpush1.msra.mxu0 %v70
    %298 = vmatprep.subr.mxu0 0.0
    %299 = vmatpush1.msra.mxu0 %v71
    %300 = vmatprep.subr.mxu0 0.0
    %301 = vmatpush1.msra.mxu0 %v72
    %302 = vmatprep.subr.mxu0 0.0
    %303 = vmatpush1.msra.mxu0 %v73
    %304 = vmatprep.subr.mxu0 0.0
    %305 = vmatpush1.msra.mxu0 %v74
    %306 = vmatprep.subr.mxu0 0.0
    %307 = vmatpush1.msra.mxu0 %v75
    %308 = vmatprep.subr.mxu0 0.0
    %309 = vmatpush1.msra.mxu0 %v76
    %310 = vmatprep.subr.mxu0 0.0
    %311 = vmatpush1.msra.mxu0 %v77
    %312 = vmatprep.subr.mxu0 0.0
    %313 = vmatpush1.msra.mxu0 %v78
    %314 = vmatprep.subr.mxu0 0.0
    %315 = vmatpush1.msra.mxu0 %v79
    %316 = vmatprep.subr.mxu0 0.0
    %317 = vmatpush1.msra.mxu0 %v80
    %318 = vmatprep.subr.mxu0 0.0
    %319 = vmatpush1.msra.mxu0 %v81
    %320 = vmatprep.subr.mxu0 0.0
    %321 = vmatpush1.msra.mxu0 %v82
    %322 = vmatprep.subr.mxu0 0.0
    %323 = vmatpush1.msra.mxu0 %v83
    %324 = vmatprep.subr.mxu0 0.0
    %325 = vmatpush1.msra.mxu0 %v84
    %326 = vmatprep.subr.mxu0 0.0
    %327 = vmatpush1.msra.mxu0 %v85
    %328 = vmatprep.subr.mxu0 0.0
    %329 = vmatpush1.msra.mxu0 %v86
    %330 = vmatprep.subr.mxu0 0.0
    %331 = vmatpush1.msra.mxu0 %v87
    %332 = vmatprep.subr.mxu0 0.0
    %333 = vmatpush1.msra.mxu0 %v88
    %334 = vmatprep.subr.mxu0 0.0
    %335 = vmatpush1.msra.mxu0 %v89
    %336 = vmatprep.subr.mxu0 0.0
    %337 = vmatpush1.msra.mxu0 %v90
    %338 = vmatprep.subr.mxu0 0.0
    %339 = vmatpush1.msra.mxu0 %v91
    %340 = vmatprep.subr.mxu0 0.0
    %341 = vmatpush1.msra.mxu0 %v92
    %342 = vmatprep.mubr.f32.mxu0 %v182
    %343 = vmatmul.mubr.f32.gmra.mrb[0].mxu0 %v180
    %v344 = vpop.f32.mrb[0].mxu0
    %v345 = vadd.f32 %v275, %v344
    %v346 = vpop.f32.mrb[0].mxu0
    %347 = vdwg.mxu0
    %348 = vmatprep.subr.mxu0 0.0
    %349 = vmatpush1.msra.mxu0 %v93
    %350 = vmatprep.subr.mxu0 0.0
    %351 = vmatpush1.msra.mxu0 %v94
    %352 = vmatprep.subr.mxu0 0.0
    %353 = vmatpush1.msra.mxu0 %v95
    %354 = vmatprep.subr.mxu0 0.0
    %355 = vmatpush1.msra.mxu0 %v96
    %356 = vmatprep.subr.mxu0 0.0
    %357 = vmatpush1.msra.mxu0 %v97
    %358 = vmatprep.subr.mxu0 0.0
    %359 = vmatpush1.msra.mxu0 %v98
    %360 = vmatprep.subr.mxu0 0.0
    %361 = vmatpush1.msra.mxu0 %v99
    %362 = vmatprep.subr.mxu0 0.0
    %363 = vmatpush1.msra.mxu0 %v100
    %364 = vmatprep.subr.mxu0 0.0
    %365 = vmatpush1.msra.mxu0 %v101
    %366 = vmatprep.subr.mxu0 0.0
    %367 = vmatpush1.msra.mxu0 %v102
    %368 = vmatprep.subr.mxu0 0.0
    %369 = vmatpush1.msra.mxu0 %v103
    %370 = vmatprep.subr.mxu0 0.0
    %371 = vmatpush1.msra.mxu0 %v104
    %372 = vmatprep.subr.mxu0 0.0
    %373 = vmatpush1.msra.mxu0 %v105
    %374 = vmatprep.subr.mxu0 0.0
    %375 = vmatpush1.msra.mxu0 %v106
    %376 = vmatprep.subr.mxu0 0.0
    %377 = vmatpush1.msra.mxu0 %v107
    %378 = vmatprep.subr.mxu0 0.0
    %379 = vmatpush1.msra.mxu0 %v108
    %380 = vmatprep.subr.mxu0 0.0
    %381 = vmatpush1.msra.mxu0 %v109
    %382 = vmatprep.subr.mxu0 0.0
    %383 = vmatpush1.msra.mxu0 %v110
    %384 = vmatprep.subr.mxu0 0.0
    %385 = vmatpush1.msra.mxu0 %v111
    %386 = vmatprep.subr.mxu0 0.0
    %387 = vmatpush1.msra.mxu0 %v112
    %388 = vmatprep.subr.mxu0 0.0
    %389 = vmatpush1.msra.mxu0 %v113
    %390 = vmatprep.subr.mxu0 0.0
    %391 = vmatpush1.msra.mxu0 %v114
    %392 = vmatprep.subr.mxu0 0.0
    %393 = vmatpush1.msra.mxu0 %v115
    %394 = vmatprep.subr.mxu0 0.0
    %395 = vmatpush1.msra.mxu0 %v116
    %396 = vmatprep.subr.mxu0 0.0
    %397 = vmatpush1.msra.mxu0 %v117
    %398 = vmatprep.subr.mxu0 0.0
    %399 = vmatpush1.msra.mxu0 %v118
    %400 = vmatprep.subr.mxu0 0.0
    %401 = vmatpush1.msra.mxu0 %v119
    %402 = vmatprep.subr.mxu0 0.0
    %403 = vmatpush1.msra.mxu0 %v120
    %404 = vmatprep.subr.mxu0 0.0
    %405 = vmatpush1.msra.mxu0 %v121
    %406 = vmatprep.subr.mxu0 0.0
    %407 = vmatpush1.msra.mxu0 %v122
    %408 = vmatprep.subr.mxu0 0.0
    %409 = vmatpush1.msra.mxu0 %v123
    %410 = vmatprep.subr.mxu0 0.0
    %411 = vmatpush1.msra.mxu0 %v124
    %412 = vmatprep.mubr.f32.mxu0 %v198
    %413 = vmatmul.mubr.f32.gmra.mrb[0].mxu0 %v190
    %v414 = vpop.f32.mrb[0].mxu0
    %v415 = vadd.f32 %v345, %v414
    %v416 = vpop.f32.mrb[0].mxu0
    %417 = vdwg.mxu0
    %418 = vmatprep.subr.mxu0 0.0
    %419 = vmatpush1.msra.mxu0 %v125
    %420 = vmatprep.subr.mxu0 0.0
    %421 = vmatpush1.msra.mxu0 %v126
    %422 = vmatprep.subr.mxu0 0.0
    %423 = vmatpush1.msra.mxu0 %v127
    %424 = vmatprep.subr.mxu0 0.0
    %425 = vmatpush1.msra.mxu0 %v128
    %426 = vmatprep.subr.mxu0 0.0
    %427 = vmatpush1.msra.mxu0 %v129
    %428 = vmatprep.subr.mxu0 0.0
    %429 = vmatpush1.msra.mxu0 %v130
    %430 = vmatprep.subr.mxu0 0.0
    %431 = vmatpush1.msra.mxu0 %v131
    %432 = vmatprep.subr.mxu0 0.0
    %433 = vmatpush1.msra.mxu0 %v132
    %434 = vmatprep.subr.mxu0 0.0
    %435 = vmatpush1.msra.mxu0 %v133
    %436 = vmatprep.subr.mxu0 0.0
    %437 = vmatpush1.msra.mxu0 %v134
    %438 = vmatprep.subr.mxu0 0.0
    %439 = vmatpush1.msra.mxu0 %v135
    %440 = vmatprep.subr.mxu0 0.0
    %441 = vmatpush1.msra.mxu0 %v136
    %442 = vmatprep.subr.mxu0 0.0
    %443 = vmatpush1.msra.mxu0 %v137
    %444 = vmatprep.subr.mxu0 0.0
    %445 = vmatpush1.msra.mxu0 %v138
    %446 = vmatprep.subr.mxu0 0.0
    %447 = vmatpush1.msra.mxu0 %v139
    %448 = vmatprep.subr.mxu0 0.0
    %449 = vmatpush1.msra.mxu0 %v140
    %450 = vmatprep.subr.mxu0 0.0
    %451 = vmatpush1.msra.mxu0 %v141
    %452 = vmatprep.subr.mxu0 0.0
    %453 = vmatpush1.msra.mxu0 %v142
    %454 = vmatprep.subr.mxu0 0.0
    %455 = vmatpush1.msra.mxu0 %v143
    %456 = vmatprep.subr.mxu0 0.0
    %457 = vmatpush1.msra.mxu0 %v144
    %458 = vmatprep.subr.mxu0 0.0
    %459 = vmatpush1.msra.mxu0 %v145
    %460 = vmatprep.subr.mxu0 0.0
    %461 = vmatpush1.msra.mxu0 %v146
    %462 = vmatprep.subr.mxu0 0.0
    %463 = vmatpush1.msra.mxu0 %v147
    %464 = vmatprep.subr.mxu0 0.0
    %465 = vmatpush1.msra.mxu0 %v148
    %466 = vmatprep.subr.mxu0 0.0
    %467 = vmatpush1.msra.mxu0 %v149
    %468 = vmatprep.subr.mxu0 0.0
    %469 = vmatpush1.msra.mxu0 %v150
    %470 = vmatprep.subr.mxu0 0.0
    %471 = vmatpush1.msra.mxu0 %v151
    %472 = vmatprep.subr.mxu0 0.0
    %473 = vmatpush1.msra.mxu0 %v152
    %474 = vmatprep.subr.mxu0 0.0
    %475 = vmatpush1.msra.mxu0 %v153
    %476 = vmatprep.subr.mxu0 0.0
    %477 = vmatpush1.msra.mxu0 %v154
    %478 = vmatprep.subr.mxu0 0.0
    %479 = vmatpush1.msra.mxu0 %v155
    %480 = vmatprep.subr.mxu0 0.0
    %481 = vmatpush1.msra.mxu0 %v156
    %482 = vmatprep.mubr.f32.mxu0 %v199
    %483 = vmatmul.mubr.f32.gmra.mrb[0].mxu0 %v197
    %v484 = vpop.f32.mrb[0].mxu0
    %v485 = vadd.f32 %v415, %v484
    %v486 = vpop.f32.mrb[0].mxu0
    %487 = vdwg.mxu0
    %v488 = vmax.f32 %v485, 0.0
    %v489 = vld [vmem:[%s3] sm:$0xff]
    %v490 = vld [vmem:[%s3 + $0x8] sm:$0xff]
    %v491 = vld [vmem:[%s3 + $0x10] sm:$0xff]
    %v492 = vld [vmem:[%s3 + $0x18] sm:$0xff]
    %v493 = vld [vmem:[%s3 + $0x20] sm:$0xff]
    %v494 = vld [vmem:[%s3 + $0x28] sm:$0xff]
    %v495 = vld [vmem:[%s3 + $0x30] sm:$0xff]
    %v496 = vld [vmem:[%s3 + $0x38] sm:$0xff]
    %v497 = vld [vmem:[%s3 + $0x40] sm:$0xff]
    %v498 = vld [vmem:[%s3 + $0x48] sm:$0xff]
    %v499 = vld [vmem:[%s3 + $0x50] sm:$0xff]
    %v500 = vld [vmem:[%s3 + $0x58] sm:$0xff]
    %v501 = vld [vmem:[%s3 + $0x60] sm:$0xff]
    %v502 = vld [vmem:[%s3 + $0x68] sm:$0xff]
    %v503 = vld [vmem:[%s3 + $0x70] sm:$0xff]
    %v504 = vld [vmem:[%s3 + $0x78] sm:$0xff]
    %v505 = vld [vmem:[%s4] sm:$0x1]
    %v507 = vlaneseq
    %v508 = vshrl.u32 %v507, 7
    %v509 = vsub.s32 0, %v508
    %v510 = vrot.slane %v505, %v509
    %512 = vmatprep.subr.mxu0 0.0
    %513 = vmatpush1.msra.mxu0 %v489
    %514 = vmatprep.subr.mxu0 0.0
    %515 = vmatpush1.msra.mxu0 %v490
    %516 = vmatprep.subr.mxu0 0.0
    %517 = vmatpush1.msra.mxu0 %v491
    %518 = vmatprep.subr.mxu0 0.0
    %519 = vmatpush1.msra.mxu0 %v492
    %520 = vmatprep.subr.mxu0 0.0
    %521 = vmatpush1.msra.mxu0 %v493
    %522 = vmatprep.subr.mxu0 0.0
    %523 = vmatpush1.msra.mxu0 %v494
    %524 = vmatprep.subr.mxu0 0.0
    %525 = vmatpush1.msra.mxu0 %v495
    %526 = vmatprep.subr.mxu0 0.0
    %527 = vmatpush1.msra.mxu0 %v496
    %528 = vmatprep.subr.mxu0 0.0
    %529 = vmatpush1.msra.mxu0 %v497
    %530 = vmatprep.subr.mxu0 0.0
    %531 = vmatpush1.msra.mxu0 %v498
    %532 = vmatprep.subr.mxu0 0.0
    %533 = vmatpush1.msra.mxu0 %v499
    %534 = vmatprep.subr.mxu0 0.0
    %535 = vmatpush1.msra.mxu0 %v500
    %536 = vmatprep.subr.mxu0 0.0
    %537 = vmatpush1.msra.mxu0 %v501
    %538 = vmatprep.subr.mxu0 0.0
    %539 = vmatpush1.msra.mxu0 %v502
    %540 = vmatprep.subr.mxu0 0.0
    %541 = vmatpush1.msra.mxu0 %v503
    %542 = vmatprep.subr.mxu0 0.0
    %543 = vmatpush1.msra.mxu0 %v504
    %544 = vmatprep.subr.mxu0 0.0
    %545 = vmatpush1.msra.mxu0 0.0
    %546 = vmatprep.subr.mxu0 0.0
    %547 = vmatpush1.msra.mxu0 0.0
    %548 = vmatprep.subr.mxu0 0.0
    %549 = vmatpush1.msra.mxu0 0.0
    %550 = vmatprep.subr.mxu0 0.0
    %551 = vmatpush1.msra.mxu0 0.0
    %552 = vmatprep.subr.mxu0 0.0
    %553 = vmatpush1.msra.mxu0 0.0
    %554 = vmatprep.subr.mxu0 0.0
    %555 = vmatpush1.msra.mxu0 0.0
    %556 = vmatprep.subr.mxu0 0.0
    %557 = vmatpush1.msra.mxu0 0.0
    %558 = vmatprep.subr.mxu0 0.0
    %559 = vmatpush1.msra.mxu0 0.0
    %560 = vmatprep.subr.mxu0 0.0
    %561 = vmatpush1.msra.mxu0 0.0
    %562 = vmatprep.subr.mxu0 0.0
    %563 = vmatpush1.msra.mxu0 0.0
    %564 = vmatprep.subr.mxu0 0.0
    %565 = vmatpush1.msra.mxu0 0.0
    %566 = vmatprep.subr.mxu0 0.0
    %567 = vmatpush1.msra.mxu0 0.0
    %568 = vmatprep.subr.mxu0 0.0
    %569 = vmatpush1.msra.mxu0 0.0
    %570 = vmatprep.subr.mxu0 0.0
    %571 = vmatpush1.msra.mxu0 0.0
    %572 = vmatprep.subr.mxu0 0.0
    %573 = vmatpush1.msra.mxu0 0.0
    %574 = vmatprep.subr.mxu0 0.0
    %575 = vmatpush1.msra.mxu0 0.0
    %576 = vmatprep.mubr.f32.mxu0 0.0
    %577 = vmatmul.mubr.f32.gmra.mrb[0].mxu0 %v488
    %v578 = vpop.f32.mrb[0].mxu0
    %v579 = vadd.f32 %v510, %v578
    %v580 = vpop.f32.mrb[0].mxu0
    %581 = vdwg.mxu0
    %v582 = vmax.f32 %v579, 0.0
    %v583 = vld [vmem:[%s5] sm:$0xff]
    %v584 = vld [vmem:[%s5 + $0x8] sm:$0xff]
    %v585 = vld [vmem:[%s5 + $0x10] sm:$0xff]
    %v586 = vld [vmem:[%s5 + $0x18] sm:$0xff]
    %v587 = vld [vmem:[%s5 + $0x20] sm:$0xff]
    %v588 = vld [vmem:[%s5 + $0x28] sm:$0xff]
    %v589 = vld [vmem:[%s5 + $0x30] sm:$0xff]
    %v590 = vld [vmem:[%s5 + $0x38] sm:$0xff]
    %v591 = vld [vmem:[%s5 + $0x40] sm:$0xff]
    %v592 = vld [vmem:[%s5 + $0x48] sm:$0xff]
    %v593 = vld [vmem:[%s5 + $0x50] sm:$0xff]
    %v594 = vld [vmem:[%s5 + $0x58] sm:$0xff]
    %v595 = vld [vmem:[%s5 + $0x60] sm:$0xff]
    %v596 = vld [vmem:[%s5 + $0x68] sm:$0xff]
    %v597 = vld [vmem:[%s5 + $0x70] sm:$0xff]
    %v598 = vld [vmem:[%s5 + $0x78] sm:$0xff]
    %v599 = vld [vmem:[%s6] sm:$0x1]
    %v601 = vlaneseq
    %v602 = vshrl.u32 %v601, 7
    %v603 = vsub.s32 0, %v602
    %v604 = vrot.slane %v599, %v603
    %606 = vmatprep.subr.mxu0 0.0
    %607 = vmatpush1.msra.mxu0 %v583
    %608 = vmatprep.subr.mxu0 0.0
    %609 = vmatpush1.msra.mxu0 %v584
    %610 = vmatprep.subr.mxu0 0.0
    %611 = vmatpush1.msra.mxu0 %v585
    %612 = vmatprep.subr.mxu0 0.0
    %613 = vmatpush1.msra.mxu0 %v586
    %614 = vmatprep.subr.mxu0 0.0
    %615 = vmatpush1.msra.mxu0 %v587
    %616 = vmatprep.subr.mxu0 0.0
    %617 = vmatpush1.msra.mxu0 %v588
    %618 = vmatprep.subr.mxu0 0.0
    %619 = vmatpush1.msra.mxu0 %v589
    %620 = vmatprep.subr.mxu0 0.0
    %621 = vmatpush1.msra.mxu0 %v590
    %622 = vmatprep.subr.mxu0 0.0
    %623 = vmatpush1.msra.mxu0 %v591
    %624 = vmatprep.subr.mxu0 0.0
    %625 = vmatpush1.msra.mxu0 %v592
    %626 = vmatprep.subr.mxu0 0.0
    %627 = vmatpush1.msra.mxu0 %v593
    %628 = vmatprep.subr.mxu0 0.0
    %629 = vmatpush1.msra.mxu0 %v594
    %630 = vmatprep.subr.mxu0 0.0
    %631 = vmatpush1.msra.mxu0 %v595
    %632 = vmatprep.subr.mxu0 0.0
    %633 = vmatpush1.msra.mxu0 %v596
    %634 = vmatprep.subr.mxu0 0.0
    %635 = vmatpush1.msra.mxu0 %v597
    %636 = vmatprep.subr.mxu0 0.0
    %637 = vmatpush1.msra.mxu0 %v598
    %638 = vmatprep.subr.mxu0 0.0
    %639 = vmatpush1.msra.mxu0 0.0
    %640 = vmatprep.subr.mxu0 0.0
    %641 = vmatpush1.msra.mxu0 0.0
    %642 = vmatprep.subr.mxu0 0.0
    %643 = vmatpush1.msra.mxu0 0.0
    %644 = vmatprep.subr.mxu0 0.0
    %645 = vmatpush1.msra.mxu0 0.0
    %646 = vmatprep.subr.mxu0 0.0
    %647 = vmatpush1.msra.mxu0 0.0
    %648 = vmatprep.subr.mxu0 0.0
    %649 = vmatpush1.msra.mxu0 0.0
    %650 = vmatprep.subr.mxu0 0.0
    %651 = vmatpush1.msra.mxu0 0.0
    %652 = vmatprep.subr.mxu0 0.0
    %653 = vmatpush1.msra.mxu0 0.0
    %654 = vmatprep.subr.mxu0 0.0
    %655 = vmatpush1.msra.mxu0 0.0
    %656 = vmatprep.subr.mxu0 0.0
    %657 = vmatpush1.msra.mxu0 0.0
    %658 = vmatprep.subr.mxu0 0.0
    %659 = vmatpush1.msra.mxu0 0.0
    %660 = vmatprep.subr.mxu0 0.0
    %661 = vmatpush1.msra.mxu0 0.0
    %662 = vmatprep.subr.mxu0 0.0
    %663 = vmatpush1.msra.mxu0 0.0
    %664 = vmatprep.subr.mxu0 0.0
    %665 = vmatpush1.msra.mxu0 0.0
    %666 = vmatprep.subr.mxu0 0.0
    %667 = vmatpush1.msra.mxu0 0.0
    %668 = vmatprep.subr.mxu0 0.0
    %669 = vmatpush1.msra.mxu0 0.0
    %670 = vmatprep.mubr.f32.mxu0 0.0
    %671 = vmatmul.mubr.f32.gmra.mrb[0].mxu0 %v582
    %v672 = vpop.f32.mrb[0].mxu0
    %v673 = vadd.f32 %v604, %v672
    %v674 = vpop.f32.mrb[0].mxu0
    %675 = vdwg.mxu0
    %676 = vst [vmem:[#allocation2] sm:$0x3] %v673
    // Predicated region
    $region30: #{fc2layer_forward.1} parent=1 // pred_check
      _
    $region31: #{fc2layer_forward.1} parent=1 // pred_check_branch
      %678 = sbr.rel (0) target = $region33
    $region32: #{fc2layer_forward.1} parent=1 // pred_region
      %s680 = ssub.s32 32, 32
      %681 = vsyncadd [#allocation3], %s680
      %s683 = sshll.u32 [#allocation2], 4
      %s684 = int_to_ptr.vmem [resolvable:$true] %s683
      %686 = dma.vmem_to_hbm [thread:$0]  %s684, 32, %s7, [#allocation3]
    $region33: #{fc2layer_forward.1} parent=1 // pred_fallthru
      _
    // Predicated region
    $region34: #{fc2layer_forward.1} parent=1 // pred_check
      _
    $region35: #{fc2layer_forward.1} parent=1 // pred_check_branch
      %688 = sbr.rel (0) target = $region37
    $region36: #{fc2layer_forward.1} parent=1 // pred_region
      %689 = dma.done [#allocation3], 32
    $region37: #{fc2layer_forward.1} parent=1 // pred_fallthru
      _
    %690 = vsyncpa [#allocation3], 1

</llo_original>
